<compile_context>
chip_gen: v7x
topology: tpu7x:2x2x1
jax: 0.10.0
libtpu: 0.0.40
codegen_flags: <defaults>
</compile_context>

<pallas_src>
import jax
import jax.numpy as jnp
from jax.experimental import pallas as pl
from jax.experimental.pallas import tpu as pltpu


def _coupling_kernel(z_ref, cond_ref, w_ref, b_ref, out_ref):
    # cond: [TB, H] streamed tile, w: [2, H] resident, b: (2,) SMEM scalars.
    cond = cond_ref[...].astype(jnp.float32)
    w = w_ref[...].astype(jnp.float32)

    # VPU mul + XLU lane-reduce (keeps the MXU out of the loop entirely).
    log_scale = jnp.sum(cond * w[0:1, :], axis=-1, keepdims=True) + b_ref[0]  # [TB, 1]
    shift = jnp.sum(cond * w[1:2, :], axis=-1, keepdims=True) + b_ref[1]      # [TB, 1]
    scale = jnp.exp(log_scale)                                                # EUP

    z = z_ref[...].astype(jnp.float32)                                        # [TB, 2]
    transformed = scale * z + shift                                           # [TB, 2]

    # Assemble [z1 | scale*z2 + shift] in-register, single full-tile store.
    col = jax.lax.broadcasted_iota(jnp.int32, z.shape, dimension=1)
    out = jnp.where(col == 0, z, transformed)
    out_ref[...] = out.astype(out_ref.dtype)


def _round_up(x, m):
    return ((x + m - 1) // m) * m


def _pick_tile_b(B, H, itemsize):
    # ~4 MiB per cond buffer: >=85% of HBM roofline in measured tiled
    # streaming kernels, and 2x double-buffering (8 MiB) fits comfortably
    # inside the default scoped VMEM on all of v5e (16 MiB) / v6e (32 MiB) /
    # v7x (32 MiB scoped of 64 MiB physical).  No fixed row cap.
    budget = 4 * 1024 * 1024
    rows = budget // max(1, H * itemsize)
    rows = max(8, (rows // 8) * 8)                 # sublane-aligned
    # Keep >=2 grid steps when the batch is big enough so both TensorCores
    # get work on v7x (megacore split via dimension_semantics).
    if B >= 16:
        rows = min(rows, _round_up((B + 1) // 2, 8))
    rows = min(rows, _round_up(B, 8))
    return rows


def coupling_function(z, cond, scale_w, scale_b, shift_w, shift_b):
    """Pallas-backed forward pass of CouplingFunction.

    Args:
      z:        [B, 2]
      cond:     [B, H]   conditioner_output
      scale_w:  [H]      scale_net weight (squeezed)
      scale_b:  []       scale_net bias
      shift_w:  [H]
      shift_b:  []
    Returns:
      [B, 2] = concat([z1, exp(scale_net(cond)) * z2 + shift_net(cond)], -1)

    Note: projection math runs in f32 inside the kernel; only the HBM-side
    storage dtype of cond/z is preserved.  For bf16 inputs the result still
    differs slightly from a pure-f32 reference because cond itself is bf16.
    """
    B, two = z.shape
    assert two == 2
    H = cond.shape[-1]

    # Fuse the two Linear(H -> 1) layers into one lane-dense [2, H] weight
    # (rows broadcast cheaply across sublanes inside the kernel) and a (2,)
    # SMEM-resident bias.
    w = jnp.stack([scale_w, shift_w], axis=0).astype(jnp.float32)   # [2, H]
    b = jnp.stack([scale_b, shift_b]).astype(jnp.float32)           # (2,)

    itemsize = jnp.dtype(cond.dtype).itemsize
    tile_b = _pick_tile_b(B, H, itemsize)
    grid = (pl.cdiv(B, tile_b),)

    cost = pl.CostEstimate(
        flops=4 * B * H + 6 * B,
        transcendentals=B,
        bytes_accessed=(B * H * itemsize                         # cond read
                        + 2 * B * 2 * itemsize                   # z read + out write
                        + 2 * H * 4 + 8),                        # weights + bias
    )

    out = pl.pallas_call(
        _coupling_kernel,
        out_shape=jax.ShapeDtypeStruct((B, 2), z.dtype),
        grid=grid,
        in_specs=[
            pl.BlockSpec((tile_b, 2), lambda i: (i, 0)),          # z tile
            pl.BlockSpec((tile_b, H), lambda i: (i, 0)),          # cond tile (pipelined)
            pl.BlockSpec((2, H), lambda i: (0, 0)),               # fused weights, resident
            pl.BlockSpec(memory_space=pltpu.SMEM),                # fused bias, SMEM scalars
        ],
        out_specs=pl.BlockSpec((tile_b, 2), lambda i: (i, 0)),
        compiler_params=pltpu.CompilerParams(
            dimension_semantics=("parallel",)),
        cost_estimate=cost,
    )(z, cond, w, b)

    return out


def _ref_forward(z, cond, scale_w, scale_b, shift_w, shift_b):
    """Pure-JAX reference matching the PyTorch forward."""
    z1 = z[:, 0:1]
    z2 = z[:, 1:2]
    scale = jnp.exp(cond @ scale_w[:, None] + scale_b)
    shift = cond @ shift_w[:, None] + shift_b
    return jnp.concatenate([z1, scale * z2 + shift], axis=-1)


if __name__ == "__main__":
    B = 8
    H = 32  # hidden_dim

    key = jax.random.PRNGKey(0)
    k_z, k_c, k_sw, k_sb, k_hw, k_hb = jax.random.split(key, 6)

    z = jax.random.normal(k_z, (B, 2), dtype=jnp.float32)
    cond = jax.random.normal(k_c, (B, H), dtype=jnp.float32)

    # Deterministic nn.Linear-style init: U(-1/sqrt(H), 1/sqrt(H))
    bound = 1.0 / jnp.sqrt(jnp.float32(H))
    scale_w = jax.random.uniform(k_sw, (H,), minval=-bound, maxval=bound, dtype=jnp.float32)
    scale_b = jax.random.uniform(k_sb, (), minval=-bound, maxval=bound, dtype=jnp.float32)
    shift_w = jax.random.uniform(k_hw, (H,), minval=-bound, maxval=bound, dtype=jnp.float32)
    shift_b = jax.random.uniform(k_hb, (), minval=-bound, maxval=bound, dtype=jnp.float32)

    out = coupling_function(z, cond, scale_w, scale_b, shift_w, shift_b)
    jax.block_until_ready(out)

    ref = _ref_forward(z, cond, scale_w, scale_b, shift_w, shift_b)
    assert out.shape == (B, 2)
    assert jnp.allclose(out, ref, atol=1e-5, rtol=1e-5), "Pallas output mismatch vs reference"

    print("KERNEL_OK")
</pallas_src>

<mosaic_0001>
module attributes {stable_mosaic.version = 11 : i64} {
  func.func @_coupling_kernel(%arg0: i32, %arg1: memref<8x2xf32, #tpu.memory_space<vmem>>, %arg2: memref<8x32xf32, #tpu.memory_space<vmem>>, %arg3: memref<2x32xf32, #tpu.memory_space<vmem>>, %arg4: memref<2xf32, #tpu.memory_space<smem>>, %arg5: memref<8x2xf32, #tpu.memory_space<vmem>>) attributes {dimension_semantics = [#tpu.dimension_semantics<parallel>], iteration_bounds = array<i64: 1>, scalar_prefetch = 0 : i64, scratch_operands = 0 : i64, tpu.core_type = #tpu.core_type<tc>, window_params = [{transform_indices = @transform_0, window_bounds = array<i64: 8, 2>}, {transform_indices = @transform_1, window_bounds = array<i64: 8, 32>}, {pipeline_mode = #tpu.pipeline_mode<synchronous>, transform_indices = @transform_2, window_bounds = array<i64: 2, 32>}, {transform_indices = @transform_3, window_bounds = array<i64: 2>}, {transform_indices = @transform_4, window_bounds = array<i64: 8, 2>}]} {
    %c0 = arith.constant 0 : index
    %c0_0 = arith.constant 0 : index
    %0 = vector.load %arg2[%c0, %c0_0] : memref<8x32xf32, #tpu.memory_space<vmem>>, vector<8x32xf32>
    %c0_1 = arith.constant 0 : index
    %c0_2 = arith.constant 0 : index
    %1 = vector.load %arg3[%c0_1, %c0_2] : memref<2x32xf32, #tpu.memory_space<vmem>>, vector<2x32xf32>
    %2 = vector.extract_strided_slice %1 {offsets = [0, 0], sizes = [1, 32], strides = [1, 1]} : vector<2x32xf32> to vector<1x32xf32>
    %3 = vector.broadcast %2 : vector<1x32xf32> to vector<8x32xf32>
    %4 = arith.mulf %0, %3 : vector<8x32xf32>
    %cst = arith.constant dense<0.000000e+00> : vector<8xf32>
    %5 = vector.multi_reduction <add>, %4, %cst [1] : vector<8x32xf32> to vector<8xf32>
    %6 = vector.shape_cast %5 : vector<8xf32> to vector<8x1xf32>
    %c0_3 = arith.constant 0 : index
    %7 = memref.load %arg4[%c0_3] : memref<2xf32, #tpu.memory_space<smem>>
    %8 = vector.broadcast %7 : f32 to vector<8x1xf32>
    %9 = arith.addf %6, %8 : vector<8x1xf32>
    %10 = vector.extract_strided_slice %1 {offsets = [1, 0], sizes = [1, 32], strides = [1, 1]} : vector<2x32xf32> to vector<1x32xf32>
    %11 = vector.broadcast %10 : vector<1x32xf32> to vector<8x32xf32>
    %12 = arith.mulf %0, %11 : vector<8x32xf32>
    %cst_4 = arith.constant dense<0.000000e+00> : vector<8xf32>
    %13 = vector.multi_reduction <add>, %12, %cst_4 [1] : vector<8x32xf32> to vector<8xf32>
    %14 = vector.shape_cast %13 : vector<8xf32> to vector<8x1xf32>
    %c1 = arith.constant 1 : index
    %15 = memref.load %arg4[%c1] : memref<2xf32, #tpu.memory_space<smem>>
    %16 = vector.broadcast %15 : f32 to vector<8x1xf32>
    %17 = arith.addf %14, %16 : vector<8x1xf32>
    %18 = math.exp %9 : vector<8x1xf32>
    %c0_5 = arith.constant 0 : index
    %c0_6 = arith.constant 0 : index
    %19 = vector.load %arg1[%c0_5, %c0_6] : memref<8x2xf32, #tpu.memory_space<vmem>>, vector<8x2xf32>
    %20 = vector.broadcast %18 : vector<8x1xf32> to vector<8x2xf32>
    %21 = arith.mulf %20, %19 : vector<8x2xf32>
    %22 = vector.broadcast %17 : vector<8x1xf32> to vector<8x2xf32>
    %23 = arith.addf %21, %22 : vector<8x2xf32>
    %24 = tpu.iota {dimensions = array<i32: 1>} : vector<8x2xi32>
    %c0_i32 = arith.constant 0 : i32
    %25 = vector.broadcast %c0_i32 : i32 to vector<8x2xi32>
    %26 = arith.cmpi eq, %24, %25 : vector<8x2xi32>
    %27 = arith.select %26, %19, %23 : vector<8x2xi1>, vector<8x2xf32>
    %c0_7 = arith.constant 0 : index
    %c0_8 = arith.constant 0 : index
    %28 = vector.load %arg5[%c0_7, %c0_8] : memref<8x2xf32, #tpu.memory_space<vmem>>, vector<8x2xf32>
    tpu.vector_store %arg5[%c0_7, %c0_8], %27 {strides = array<i32>} : memref<8x2xf32, #tpu.memory_space<vmem>>, vector<8x2xf32>,
    return
  }
  func.func @transform_0(%arg0: i32) -> (i32, i32) {
    %c0_i32 = arith.constant 0 : i32
    %c0_i32_0 = arith.constant 0 : i32
    return %arg0, %c0_i32 : i32, i32
  }
  func.func @transform_1(%arg0: i32) -> (i32, i32) {
    %c0_i32 = arith.constant 0 : i32
    %c0_i32_0 = arith.constant 0 : i32
    return %arg0, %c0_i32 : i32, i32
  }
  func.func @transform_2(%arg0: i32) -> (i32, i32) {
    %c0_i32 = arith.constant 0 : i32
    %c0_i32_0 = arith.constant 0 : i32
    %c0_i32_1 = arith.constant 0 : i32
    return %c0_i32, %c0_i32_0 : i32, i32
  }
  func.func @transform_3(%arg0: i32) -> i32 {
    %c0_i32 = arith.constant 0 : i32
    %c0_i32_0 = arith.constant 0 : i32
    return %c0_i32 : i32
  }
  func.func @transform_4(%arg0: i32) -> (i32, i32) {
    %c0_i32 = arith.constant 0 : i32
    %c0_i32_0 = arith.constant 0 : i32
    return %arg0, %c0_i32 : i32, i32
  }
}

</mosaic_0001>

<llo_original>
// kernel: tpu_custom_call.1
$region0: #{tpu_custom_call.1}
  #allocation0 [shape = 'u32[]', space=smem, size = 0x4, offset = 0x4, fixed_abs, tag = 'smem constant byte address 0x4 - core index']
  #allocation1 [shape = 'u32[144,128]{1,0:T(1,128)}', space=vmem, size = 0x12000, scoped, tag = 'internal scratch']
  %s0 = inlined_call_operand.vmem [shape: f32[8,2], index: 0, kind: input, shape index: {}]
  %s1 = inlined_call_operand.vmem [shape: f32[8,32], index: 1, kind: input, shape index: {}]
  %s2 = inlined_call_operand.vmem [shape: f32[2,32], index: 2, kind: input, shape index: {}]
  %s3 = inlined_call_operand.vmem [shape: f32[2], index: 3, kind: input, shape index: {}]
  %s4 = inlined_call_operand.vmem [shape: f32[8,2], index: 4, kind: output, shape index: {}]
  %s5 = sld [smem:[#allocation0]]
  $region30: #{tpu_custom_call.1} parent=0
    _
  %s7 = ssub.s32 1, %s5
  %s8 = scalar_select 0, %s7, %s5
  $region1: #{tpu_custom_call.1} parent=0
    #allocation2 [shape = 'u8[512]{0}', space=smem, size = 0x200, scoped, tag = 'input window, operand 3, single buffered']
    #allocation3 [shape = 's32[1]{0}', space=sflag, size = 0x4, scoped, tag = 'scoped memory for tpu_custom_call.1']
    %9 = vsyncpa [#allocation3], 0
    // Predicated region
    $region2: #{tpu_custom_call.1} parent=1 // pred_check
      _
    $region3: #{tpu_custom_call.1} parent=1 // pred_check_branch
      %11 = sbr.rel (0) target = $region5
    $region4: #{tpu_custom_call.1} parent=1 // pred_region
      _
    $region5: #{tpu_custom_call.1} parent=1 // pred_fallthru
      _
    // Predicated region
    $region6: #{tpu_custom_call.1} parent=1 // pred_check
      _
    $region7: #{tpu_custom_call.1} parent=1 // pred_check_branch
      %13 = sbr.rel (0) target = $region9
    $region8: #{tpu_custom_call.1} parent=1 // pred_region
      _
    $region9: #{tpu_custom_call.1} parent=1 // pred_fallthru
      _
    // Predicated region
    $region10: #{tpu_custom_call.1} parent=1 // pred_check
      _
    $region11: #{tpu_custom_call.1} parent=1 // pred_check_branch
      %15 = sbr.rel (0) target = $region13
    $region12: #{tpu_custom_call.1} parent=1 // pred_region
      _
    $region13: #{tpu_custom_call.1} parent=1 // pred_fallthru
      _
    // Predicated region
    $region14: #{tpu_custom_call.1} parent=1 // pred_check
      _
    $region15: #{tpu_custom_call.1} parent=1 // pred_check_branch
      %17 = sbr.rel (0) target = $region17
    $region16: #{tpu_custom_call.1} parent=1 // pred_region
      %s19 = ssub.s32 16, 16
      %20 = vsyncadd [#allocation3], %s19
      %s22 = sshll.u32 %s3, 4
      %s23 = int_to_ptr.vmem [resolvable:$true] %s22
      %25 = dma.vmem_to_smem %s23, 16, [#allocation2], [#allocation3]
    $region17: #{tpu_custom_call.1} parent=1 // pred_fallthru
      _
    // Predicated region
    $region18: #{tpu_custom_call.1} parent=1 // pred_check
      _
    $region19: #{tpu_custom_call.1} parent=1 // pred_check_branch
      %27 = sbr.rel (0) target = $region21
    $region20: #{tpu_custom_call.1} parent=1 // pred_region
      %28 = dma.done [#allocation3], 16
    $region21: #{tpu_custom_call.1} parent=1 // pred_fallthru
      _
    %29 = sfence
    %v30 = vld [vmem:[%s1] sm:$0xff]
    %v31 = vld [vmem:[%s2] sm:$0x3]
    %v32 = vlaneseq
    %v33 = vshrl.u32 %v32, 7
    %v34 = vsub.s32 0, %v33
    %v35 = vrot.slane %v31, %v34
    %v36 = vmul.f32 %v30, %v35
    %vm37 = vcmask 261120
    %v38 = vsel %vm37, %v36, 0.0
    %39 = vadd.xlane.f32.xlu0 %v38
    %v40 = vpop.xlane.xlu0 %39
    %s41 = sld [smem:[#allocation2]]
    %v42 = vstv %s41
    %v43 = vadd.f32 %v40, %v42
    %v44 = vlaneseq
    %v45 = vshrl.u32 %v44, 7
    %v46 = vsub.s32 1, %v45
    %v47 = vrot.slane %v31, %v46
    %v48 = vmul.f32 %v30, %v47
    %v49 = vsel %vm37, %v48, 0.0
    %50 = vadd.xlane.f32.xlu0 %v49
    %v51 = vpop.xlane.xlu0 %50
    %s52 = sld [smem:[#allocation2 + $0x1]]
    %v53 = vstv %s52
    %v54 = vadd.f32 %v51, %v53
    %v55 = vmul.f32 %v43, 1.442695
    %v56 = vpow.pop %v55
    %v57 = vld [vmem:[%s0] sm:$0xff]
    %v58 = vmul.f32 %v56, %v57
    %v59 = vadd.f32 %v58, %v54
    %v60 = vlaneseq
    %v61 = vand.u32 %v60, 127
    %vm62 = vcmp.eq.s32.totalorder %v61, 0
    %v63 = vsel %vm62, %v57, %v59
    %vm64 = vcmask 15360
    %65 = vst.msk [vmem:[%s4] sm:$0xff] %vm64, %v63
    // Predicated region
    $region22: #{tpu_custom_call.1} parent=1 // pred_check
      _
    $region23: #{tpu_custom_call.1} parent=1 // pred_check_branch
      %67 = sbr.rel (0) target = $region25
    $region24: #{tpu_custom_call.1} parent=1 // pred_region
      _
    $region25: #{tpu_custom_call.1} parent=1 // pred_fallthru
      _
    // Predicated region
    $region26: #{tpu_custom_call.1} parent=1 // pred_check
      _
    $region27: #{tpu_custom_call.1} parent=1 // pred_check_branch
      %69 = sbr.rel (0) target = $region29
    $region28: #{tpu_custom_call.1} parent=1 // pred_region
      _
    $region29: #{tpu_custom_call.1} parent=1 // pred_fallthru
      _
    %70 = vsyncpa [#allocation3], 1

</llo_original>
